<compile_context>
chip_gen: v7x
topology: tpu7x:2x2x1
jax: 0.10.0
libtpu: 0.0.40
codegen_flags: <defaults>
</compile_context>

<pallas_src>
import jax
import jax.numpy as jnp
from jax.experimental import pallas as pl
from jax.experimental.pallas import tpu as pltpu


# ----------------------------------------------------------------------------
# One-time bank preparation (outside the training step).
# ----------------------------------------------------------------------------
def _choose_tile_n(n):
    # Aim for >= 8 grid steps (>= 4 per TensorCore under megacore) when N
    # allows; lane-dense tiles capped at 8192 columns.
    target = pl.cdiv(n, 8)
    return max(128, min(8192, ((target + 127) // 128) * 128))


def prepare_bank(bank_points, *, dtype=jnp.bfloat16, tile_n=None):
    """Transpose to (D, N) lane-dense layout, cast, and pad ONCE to a tile
    multiple.  Padded columns are zero; the kernel masks them to 0 after exp.

    Returns (bank_t, n_valid, tile_n) with bank_t of shape (D, n_pad).
    """
    n, d = bank_points.shape
    if tile_n is None:
        tile_n = _choose_tile_n(n)
    n_pad = pl.cdiv(n, tile_n) * tile_n
    bank_t = jnp.asarray(bank_points.T, dtype=dtype)
    if n_pad != n:
        bank_t = jnp.pad(bank_t, ((0, 0), (0, n_pad - n)))
    return bank_t, n, tile_n


# ----------------------------------------------------------------------------
# Pallas kernel: exp( xn @ bank_tile ), masking padded bank columns to 0.
# ----------------------------------------------------------------------------
def _make_sim_kernel(tile_n, n_valid, n_pad, out_dtype):
    has_pad = n_pad != n_valid

    def kernel(pts_ref, bank_ref, out_ref):
        # pts_ref : (B, D)   l2-normalized points, pre-scaled by 1/t, bank dtype;
        #                    resident across the whole grid (index_map -> (0,0)).
        # bank_ref: (D, TN)  lane-dense memory-bank tile (last dim = bank index).
        # out_ref : (B, TN)  one tile of all_sim; lane-dense, unmasked stores.
        s = jnp.dot(pts_ref[...], bank_ref[...],
                    preferred_element_type=jnp.float32)   # MXU, f32 accumulation
        e = jnp.exp(s)                                    # EUP, f32
        if not has_pad:
            out_ref[...] = e.astype(out_dtype)
        else:
            j = pl.program_id(0)
            tile_end = (j + 1) * tile_n

            @pl.when(tile_end <= n_valid)                 # fully-valid tiles
            def _():
                out_ref[...] = e.astype(out_dtype)

            @pl.when(tile_end > n_valid)                  # ragged / padded tile
            def _():
                col = jax.lax.broadcasted_iota(jnp.int32, e.shape, 1)
                valid = n_valid - j * tile_n
                # Padded columns -> 0 so they can never enter top-k downstream.
                out_ref[...] = jnp.where(col < valid, e, 0.0).astype(out_dtype)

    return kernel


def all_similarities(points, bank_t, n_valid, t, *, tile_n,
                     out_dtype=jnp.float32, eps=1e-12, bank_buffers=2):
    """exp(l2_normalize(points) @ bank / t) via Pallas.

    points : (B, D) float32
    bank_t : (D, n_pad) pre-padded, transposed memory bank (bf16 or f32)
    n_valid: number of real bank entries (<= n_pad); padded cols come out as 0
    returns: (B, n_pad) out_dtype
    """
    B, D = points.shape
    Dg, n_pad = bank_t.shape
    assert Dg == D
    assert n_pad % tile_n == 0, "bank must be pre-padded to a tile multiple"

    # Hoisted out of the per-tile loop: normalize rows (rsqrt; eps so a zero
    # row cannot NaN) and fold in 1/t.  Pre-cast to the bank dtype so the MXU
    # runs a native (e.g. bf16 x bf16) matmul with f32 accumulation.
    x = points.astype(jnp.float32)
    inv_norm = jax.lax.rsqrt(jnp.sum(x * x, axis=1, keepdims=True) + eps)
    xn = (x * (inv_norm * (1.0 / t))).astype(bank_t.dtype)

    bank_item = jnp.dtype(bank_t.dtype).itemsize
    out_item = jnp.dtype(out_dtype).itemsize
    xn_item = jnp.dtype(xn.dtype).itemsize

    # Generation-aware VMEM budget (v7x has 64 MiB, v5e/v6e 128 MiB) with ~20%
    # headroom for Mosaic internal scratch.
    try:
        vmem_cap = int(pltpu.get_tpu_info().vmem_capacity_bytes)
    except Exception:
        vmem_cap = 64 << 20
    budget = int(vmem_cap * 0.80)

    def vmem_need(tn):
        return (max(2, bank_buffers) * D * tn * bank_item   # bank tiles (multi-buffered)
                + 2 * B * tn * out_item                     # out tiles (double-buffered)
                + B * D * xn_item)                          # resident normalized points

    # Shrink the tile (not the reported limit) if it would not fit.
    while vmem_need(tile_n) > budget and tile_n % 256 == 0:
        tile_n //= 2
    n_tiles = n_pad // tile_n
    vmem_limit = int(min(budget, max(32 << 20, vmem_need(tile_n) + (4 << 20))))

    if bank_buffers > 2:
        # Deeper buffering to hide DMA jitter behind the tiny per-tile compute.
        bank_spec = pl.BlockSpec((D, tile_n), lambda j: (0, j),
                                 pipeline_mode=pl.Buffered(bank_buffers))
    else:
        bank_spec = pl.BlockSpec((D, tile_n), lambda j: (0, j))

    cost = pl.CostEstimate(
        flops=2 * B * D * n_pad,
        transcendentals=B * n_pad,
        bytes_accessed=D * n_pad * bank_item + B * D * xn_item + B * n_pad * out_item,
    )

    out = pl.pallas_call(
        _make_sim_kernel(tile_n, n_valid, n_pad, out_dtype),
        out_shape=jax.ShapeDtypeStruct((B, n_pad), out_dtype),
        grid_spec=pl.GridSpec(
            grid=(n_tiles,),
            in_specs=[
                pl.BlockSpec((B, D), lambda j: (0, 0)),        # points (resident)
                bank_spec,                                     # bank tile (lane-dense)
            ],
            out_specs=pl.BlockSpec((B, tile_n), lambda j: (0, j)),
        ),
        compiler_params=pltpu.CompilerParams(
            dimension_semantics=("parallel",),
            vmem_limit_bytes=vmem_limit),
        cost_estimate=cost,
    )(xn, bank_t)
    return out


# ----------------------------------------------------------------------------
# InvariancePropagationLoss (forward), functional.
# ----------------------------------------------------------------------------
def propagate(point_indices, neigh, diffusion_layer):
    """Neighbour-graph diffusion; pure index gathers, static shapes."""
    matrix = neigh[point_indices]              # (B, k)
    cur_point = 0
    end_point = matrix.shape[1] - 1
    layer = 2
    while layer <= diffusion_layer:
        current_nodes = matrix[:, cur_point]
        sub_matrix = neigh[current_nodes]
        matrix = jnp.concatenate([matrix, sub_matrix], axis=1)
        if cur_point == end_point:
            layer += 1
            end_point = matrix.shape[1] - 1
        cur_point += 1
    return matrix


def update_nn(background_indices, point_indices, neigh, k):
    nei = background_indices[:, : k + 1]                       # (B, k+1)
    condition = nei == point_indices[:, None]
    backup = jnp.broadcast_to(nei[:, k : k + 1], nei.shape)
    nei_exclusive = jnp.where(condition, backup, nei)[:, :k]
    return neigh.at[point_indices].set(nei_exclusive)


def invariance_propagation_loss(points, point_indices, bank_points_t, n_valid,
                                bank_neigh, *, t, tile_n, n_background,
                                diffusion_layer, k, n_pos, exclusive=True,
                                InvP=True, hard_pos=True):
    """bank_points_t is the memory bank prepared by `prepare_bank` ((D, n_pad),
    zero-padded to a multiple of tile_n; n_valid real entries)."""
    B = points.shape[0]
    assert n_background <= n_valid

    # hot path: Pallas kernel.  Padded columns come out as exactly 0, every
    # real column is > 0 (exp), so top_k/gathers below need no extra slicing.
    all_sim = all_similarities(points, bank_points_t, n_valid, t,
                               tile_n=tile_n)                    # (B, n_pad) f32

    self_sim = all_sim[jnp.arange(B), point_indices]             # (B,)

    # TODO(synk): for very large banks, emit a per-tile partial top-n_background
    # (values + indices) as an extra kernel output and merge the
    # n_tiles*n_background candidates in JAX, instead of re-reading the full
    # (B, N) tensor with lax.top_k.
    background_sim, background_indices = jax.lax.top_k(all_sim, n_background)

    lossA = -jnp.mean(jnp.log(self_sim / jnp.sum(background_sim, axis=1) + 1e-7))

    if InvP:
        neighs = propagate(point_indices, bank_neigh, diffusion_layer)  # (B, P)
        # NOTE: like the PyTorch reference, assumes the point's own bank entry
        # is inside the top-n_background set (otherwise this can go <= 0).
        background_exclusive_sim = jnp.sum(background_sim, axis=1) - self_sim
        pos_sim = jnp.take_along_axis(all_sim, neighs, axis=1)          # (B, P)
        kpos = min(n_pos, pos_sim.shape[1])
        if hard_pos:
            hard_pos_sim = -jax.lax.top_k(-pos_sim, kpos)[0]            # smallest k
        else:
            hard_pos_sim = jax.lax.top_k(pos_sim, kpos)[0]              # largest k
        if exclusive:
            lossB = -jnp.mean(jnp.log(
                jnp.sum(hard_pos_sim, axis=1) / background_exclusive_sim + 1e-7))
        else:
            lossB = -jnp.mean(jnp.log(
                jnp.sum(hard_pos_sim, axis=1)
                / (background_exclusive_sim + self_sim) + 1e-7))
    else:
        lossB = jnp.float32(0.0)

    new_neigh = update_nn(background_indices.astype(jnp.int32),
                          point_indices, bank_neigh, k)
    return lossA, lossB, new_neigh


# ----------------------------------------------------------------------------
if __name__ == "__main__":
    # small, deterministic shapes (N deliberately not a multiple of 128 so the
    # ragged-tile masking path is exercised)
    B, D, N = 8, 32, 250
    T = 0.07
    N_BACKGROUND = 64
    DIFFUSION_LAYER = 3
    K = 4
    N_POS = 8

    key = jax.random.PRNGKey(0)
    k1, k2, k3, k4 = jax.random.split(key, 4)

    points = jax.random.normal(k1, (B, D), dtype=jnp.float32)
    bank_points = jax.random.normal(k2, (N, D), dtype=jnp.float32)
    bank_points = bank_points / jnp.linalg.norm(bank_points, axis=1, keepdims=True)

    # Persistent memory bank: prepared ONCE — transposed lane-dense (D, n_pad)
    # layout, bf16 stream dtype, padded to a tile multiple.  No per-call
    # pad/transpose/slice is ever paid on the hot path.
    bank_points_t, n_valid, tile_n = prepare_bank(bank_points, dtype=jnp.bfloat16)

    bank_neigh = jax.random.randint(k3, (N, K), 0, N, dtype=jnp.int32)
    point_indices = jax.random.randint(k4, (B,), 0, N, dtype=jnp.int32)

    lossA, lossB, new_neigh = invariance_propagation_loss(
        points, point_indices, bank_points_t, n_valid, bank_neigh,
        t=T, tile_n=tile_n, n_background=N_BACKGROUND,
        diffusion_layer=DIFFUSION_LAYER, k=K, n_pos=N_POS,
        exclusive=True, InvP=True, hard_pos=True)

    jax.block_until_ready((lossA, lossB, new_neigh))
    print("KERNEL_OK")
</pallas_src>

<mosaic_0001>
module attributes {stable_mosaic.version = 11 : i64} {
  func.func @kernel(%arg0: i32, %arg1: memref<8x32xbf16, #tpu.memory_space<vmem>>, %arg2: memref<32x128xbf16, #tpu.memory_space<vmem>>, %arg3: memref<8x128xf32, #tpu.memory_space<vmem>>) attributes {dimension_semantics = [#tpu.dimension_semantics<parallel>], iteration_bounds = array<i64: 2>, scalar_prefetch = 0 : i64, scratch_operands = 0 : i64, tpu.core_type = #tpu.core_type<tc>, window_params = [{pipeline_mode = #tpu.pipeline_mode<synchronous>, transform_indices = @transform_0, window_bounds = array<i64: 8, 32>}, {transform_indices = @transform_1, window_bounds = array<i64: 32, 128>}, {transform_indices = @transform_2, window_bounds = array<i64: 8, 128>}]} {
    %c0 = arith.constant 0 : index
    %c0_0 = arith.constant 0 : index
    %0 = vector.load %arg1[%c0, %c0_0] : memref<8x32xbf16, #tpu.memory_space<vmem>>, vector<8x32xbf16>
    %c0_1 = arith.constant 0 : index
    %c0_2 = arith.constant 0 : index
    %1 = vector.load %arg2[%c0_1, %c0_2] : memref<32x128xbf16, #tpu.memory_space<vmem>>, vector<32x128xbf16>
    %cst = arith.constant dense<0.000000e+00> : vector<8x128xf32>
    %2 = tpu.matmul %0, %1, %cst {dimension_numbers = #tpu.dot_dimension_numbers<[1], [0], [0], [1], [0, 0, 1, 1], [], []>} : vector<8x32xbf16>, vector<32x128xbf16>, vector<8x128xf32> -> vector<8x128xf32>
    %3 = math.exp %2 : vector<8x128xf32>
    %c1_i32 = arith.constant 1 : i32
    %4 = arith.addi %arg0, %c1_i32 : i32
    %c128_i32 = arith.constant 128 : i32
    %5 = arith.muli %4, %c128_i32 : i32
    %c250_i32 = arith.constant 250 : i32
    %6 = arith.cmpi sle, %5, %c250_i32 : i32
    %7 = arith.extui %6 : i1 to i32
    %c0_i32 = arith.constant 0 : i32
    %8 = arith.cmpi ne, %7, %c0_i32 : i32
    scf.if %8 {
      %c0_5 = arith.constant 0 : index
      %c0_6 = arith.constant 0 : index
      %12 = vector.load %arg3[%c0_5, %c0_6] : memref<8x128xf32, #tpu.memory_space<vmem>>, vector<8x128xf32>
      tpu.vector_store %arg3[%c0_5, %c0_6], %3 {strides = array<i32>} : memref<8x128xf32, #tpu.memory_space<vmem>>, vector<8x128xf32>,
    } else {
    }
    %c250_i32_3 = arith.constant 250 : i32
    %9 = arith.cmpi sgt, %5, %c250_i32_3 : i32
    %10 = arith.extui %9 : i1 to i32
    %c0_i32_4 = arith.constant 0 : i32
    %11 = arith.cmpi ne, %10, %c0_i32_4 : i32
    scf.if %11 {
      %12 = tpu.iota {dimensions = array<i32: 1>} : vector<8x128xi32>
      %c128_i32_5 = arith.constant 128 : i32
      %13 = arith.muli %arg0, %c128_i32_5 : i32
      %c250_i32_6 = arith.constant 250 : i32
      %14 = arith.subi %c250_i32_6, %13 : i32
      %15 = vector.broadcast %14 : i32 to vector<8x128xi32>
      %16 = arith.cmpi slt, %12, %15 : vector<8x128xi32>
      %cst_7 = arith.constant 0.000000e+00 : f32
      %17 = vector.broadcast %cst_7 : f32 to vector<8x128xf32>
      %18 = arith.select %16, %3, %17 : vector<8x128xi1>, vector<8x128xf32>
      %c0_8 = arith.constant 0 : index
      %c0_9 = arith.constant 0 : index
      %19 = vector.load %arg3[%c0_8, %c0_9] : memref<8x128xf32, #tpu.memory_space<vmem>>, vector<8x128xf32>
      tpu.vector_store %arg3[%c0_8, %c0_9], %18 {strides = array<i32>} : memref<8x128xf32, #tpu.memory_space<vmem>>, vector<8x128xf32>,
    } else {
    }
    return
  }
  func.func @transform_0(%arg0: i32) -> (i32, i32) {
    %c0_i32 = arith.constant 0 : i32
    %c0_i32_0 = arith.constant 0 : i32
    %c0_i32_1 = arith.constant 0 : i32
    return %c0_i32, %c0_i32_0 : i32, i32
  }
  func.func @transform_1(%arg0: i32) -> (i32, i32) {
    %c0_i32 = arith.constant 0 : i32
    %c0_i32_0 = arith.constant 0 : i32
    return %c0_i32, %arg0 : i32, i32
  }
  func.func @transform_2(%arg0: i32) -> (i32, i32) {
    %c0_i32 = arith.constant 0 : i32
    %c0_i32_0 = arith.constant 0 : i32
    return %c0_i32, %arg0 : i32, i32
  }
}

</mosaic_0001>

<llo_original>
// kernel: tpu_custom_call.1
$region0: #{tpu_custom_call.1}
  #allocation0 [shape = 'u32[]', space=smem, size = 0x4, offset = 0x4, fixed_abs, tag = 'smem constant byte address 0x4 - core index']
  #allocation1 [shape = 'u32[144,128]{1,0:T(1,128)}', space=vmem, size = 0x12000, scoped, tag = 'internal scratch']
  %s0 = inlined_call_operand.hbm [shape: bf16[8,32], index: 0, kind: input, shape index: {}]
  %s1 = inlined_call_operand.hbm [shape: bf16[32,256], index: 1, kind: input, shape index: {}]
  %s2 = inlined_call_operand.hbm [shape: f32[8,256], index: 2, kind: output, shape index: {}]
  %s3 = sld [smem:[#allocation0]]
  $region57: #{tpu_custom_call.1} parent=0
    _
  %s5 = ssub.s32 1, %s3
  %s6 = scalar_select 0, %s5, %s3
  $region1: #{tpu_custom_call.1} parent=0
    #allocation2 [shape = 'u8[2048]{0}', space=vmem, size = 0x800, scoped, tag = 'input window, operand 0, single buffered']
    #allocation3 [shape = 's32[2]{0}', space=sflag, size = 0x8, scoped, tag = 'scoped memory for tpu_custom_call.1']
    #allocation4 [shape = 's32[2]{0}', space=sflag, size = 0x8, scoped, tag = 'scoped memory for tpu_custom_call.1']
    #allocation5 [shape = 'u8[16384]{0}', space=vmem, size = 0x4000, scoped, tag = 'input window, operand 1']
    #allocation6 [shape = 's32[2]{0}', space=sflag, size = 0x8, scoped, tag = 'scoped memory for tpu_custom_call.1']
    #allocation7 [shape = 'u8[8192]{0}', space=vmem, size = 0x2000, scoped, tag = 'output window, operand 0']
    %7 = vsyncpa [#allocation3], 0
    %8 = vsyncpa [#allocation6], 0
    %s9 = scalar_lea.sflag [#allocation6], 1
    %10 = vsyncpa %s9, 0
    %11 = vsyncpa [#allocation4], 0
    %s12 = scalar_lea.sflag [#allocation4], 1
    %13 = vsyncpa %s12, 0
    loop: start=0, step=1, limit=4
    $region2: #{tpu_custom_call.1} parent=1 // loop_pre_header
      _
    $region3: #{tpu_custom_call.1} parent=1 // loop_header
      %s15 = sphi 0, %s19
      %p16 = scmp.ge.s32.totalorder %s15, 4
      %s23 = sphi 0, %s23
      %s25 = sphi 0, %s23
      %s26 = sphi 0, %s25
      %s40 = sphi 0, %s26
      %s46 = sphi 0, %s48
      %s49 = sphi 0, %s46
      %s50 = sphi 0, %s49
      %s66 = sphi 0, %s50
      %s72 = sphi 0, %s74
      %s75 = sphi 0, %s72
      %s76 = sphi 0, %s75
      %s92 = sphi 0, %s76
    $region4: #{tpu_custom_call.1} parent=1 // loop_header_branch
      %18 = sbr.rel (%p16) target = $region8
    $region5: #{tpu_custom_call.1} parent=1 // loop_body
      %s20 = ssub.s32 %s15, 1
      %s21 = ssub.s32 %s15, 2
      %s22 = sadd.s32 %s15, 1
      %s24 = sadd.s32 %s23, 1
      %p27 = scmp.eq.s32.totalorder %s15, 1
      %p28 = scmp.ne.s32.totalorder %s23, %s25
      %p29 = scmp.eq.s32.totalorder %s15, 0
      %p30 = por %p28, %p29
      %p31 = scmp.ne.s32.totalorder %s23, %s25
      %p32 = scmp.eq.s32.totalorder %s20, 1
      %p33 = por %p31, %p32
      %p34 = scmp.ne.s32.totalorder %s25, %s26
      %p35 = scmp.eq.s32.totalorder %s20, 0
      %p36 = por %p34, %p35
      %p37 = scmp.ne.s32.totalorder %s25, %s26
      %p38 = scmp.eq.s32.totalorder %s21, 1
      %p39 = por %p37, %p38
      %p41 = scmp.ne.s32.totalorder %s26, %s40
      %p42 = scmp.eq.s32.totalorder %s21, 0
      %p43 = por %p41, %p42
      %s44 = ssub.s32 %s15, %s22
      %p45 = scmp.eq.s32.totalorder %s44, 0
      %s47 = sadd.s32 %s46, 1
      %s48 = scalar_select %p45, %s46, %s47
      %p51 = pneg %p45
      %p52 = scmp.eq.s32.totalorder %s15, 1
      %p53 = por %p51, %p52
      %p54 = scmp.ne.s32.totalorder %s46, %s49
      %p55 = scmp.eq.s32.totalorder %s15, 0
      %p56 = por %p54, %p55
      %p57 = scmp.ne.s32.totalorder %s46, %s49
      %p58 = scmp.eq.s32.totalorder %s20, 1
      %p59 = por %p57, %p58
      %p60 = scmp.ne.s32.totalorder %s49, %s50
      %p61 = scmp.eq.s32.totalorder %s20, 0
      %p62 = por %p60, %p61
      %p63 = scmp.ne.s32.totalorder %s49, %s50
      %p64 = scmp.eq.s32.totalorder %s21, 1
      %p65 = por %p63, %p64
      %p67 = scmp.ne.s32.totalorder %s50, %s66
      %p68 = scmp.eq.s32.totalorder %s21, 0
      %p69 = por %p67, %p68
      %s70 = ssub.s32 %s15, %s22
      %p71 = scmp.eq.s32.totalorder %s70, 0
      %s73 = sadd.s32 %s72, 1
      %s74 = scalar_select %p71, %s72, %s73
      %p77 = pneg %p71
      %p78 = scmp.eq.s32.totalorder %s15, 1
      %p79 = por %p77, %p78
      %p80 = scmp.ne.s32.totalorder %s72, %s75
      %p81 = scmp.eq.s32.totalorder %s15, 0
      %p82 = por %p80, %p81
      %p83 = scmp.ne.s32.totalorder %s72, %s75
      %p84 = scmp.eq.s32.totalorder %s20, 1
      %p85 = por %p83, %p84
      %p86 = scmp.ne.s32.totalorder %s75, %s76
      %p87 = scmp.eq.s32.totalorder %s20, 0
      %p88 = por %p86, %p87
      %p89 = scmp.ne.s32.totalorder %s75, %s76
      %p90 = scmp.eq.s32.totalorder %s21, 1
      %p91 = por %p89, %p90
      %p93 = scmp.ne.s32.totalorder %s76, %s92
      %p94 = scmp.eq.s32.totalorder %s21, 0
      %p95 = por %p93, %p94
      %p96 = scmp.le.s32.totalorder 1, %s15
      %p97 = scmp.lt.s32.totalorder %s15, 3
      %p98 = pnand %p96, %p97
      %p99 = pneg %p98
      // Predicated region
      $region9: #{tpu_custom_call.1} parent=5 // pred_check
        _
      $region10: #{tpu_custom_call.1} parent=5 // pred_check_branch
        %101 = sbr.rel (%p98) target = $region12
      $region11: #{tpu_custom_call.1} parent=5 // pred_region
        %s102 = ssub.s32 %s15, 1
        // Predicated region
        $region13: #{tpu_custom_call.1} parent=11 // pred_check
          %p103 = pneg %p36
        $region14: #{tpu_custom_call.1} parent=11 // pred_check_branch
          %105 = sbr.rel (%p103) target = $region16
        $region15: #{tpu_custom_call.1} parent=11 // pred_region
          %s107 = ssub.s32 64, 64
          %108 = vsyncadd [#allocation3], %s107
          %s110 = sshll.u32 [#allocation2], 4
          %s111 = int_to_ptr.vmem [resolvable:$true] %s110
          %113 = dma.hbm_to_vmem [thread:$0]  %s0, 64, %s111, [#allocation3]
        $region16: #{tpu_custom_call.1} parent=11 // pred_fallthru
          _
      $region12: #{tpu_custom_call.1} parent=5 // pred_fallthru
        _
      %p114 = scmp.lt.s32.totalorder %s15, 2
      // Predicated region
      $region17: #{tpu_custom_call.1} parent=5 // pred_check
        %p115 = pneg %p114
      $region18: #{tpu_custom_call.1} parent=5 // pred_check_branch
        %117 = sbr.rel (%p115) target = $region20
      $region19: #{tpu_custom_call.1} parent=5 // pred_region
        // Predicated region
        $region21: #{tpu_custom_call.1} parent=19 // pred_check
          %p118 = pneg %p56
        $region22: #{tpu_custom_call.1} parent=19 // pred_check_branch
          %120 = sbr.rel (%p118) target = $region24
        $region23: #{tpu_custom_call.1} parent=19 // pred_region
          %s121 = sand.u32 %s46, 1
          %s122 = scalar_lea.sflag [#allocation6], %s121
          %s123 = sand.u32 %s46, 1
          %s124 = smul.addr %s123, 16
          %s125 = scalar_lea.vmem [#allocation5], %s124
          %s127 = ssub.s32 256, 256
          %128 = vsyncadd %s122, %s127
          %s129 = smul.addr %s15, 64
          %s130 = scalar_lea.hbm %s1, %s129
          %s131 = sshll.u32 %s125, 4
          %s132 = int_to_ptr.vmem [resolvable:$true] %s131
          %137 = dma.hbm_to_vmem [thread:$0]  %s130, 256, %s132, %s122, 128, 64, 4
        $region24: #{tpu_custom_call.1} parent=19 // pred_fallthru
          _
      $region20: #{tpu_custom_call.1} parent=5 // pred_fallthru
        _
      %p138 = scmp.le.s32.totalorder 1, %s15
      %p139 = scmp.lt.s32.totalorder %s15, 3
      %p140 = pnand %p138, %p139
      %p141 = pneg %p140
      // Predicated region
      $region25: #{tpu_custom_call.1} parent=5 // pred_check
        _
      $region26: #{tpu_custom_call.1} parent=5 // pred_check_branch
        %143 = sbr.rel (%p140) target = $region28
      $region27: #{tpu_custom_call.1} parent=5 // pred_region
        %s144 = ssub.s32 %s15, 1
        // Predicated region
        $region29: #{tpu_custom_call.1} parent=27 // pred_check
          %p145 = pneg %p36
        $region30: #{tpu_custom_call.1} parent=27 // pred_check_branch
          %147 = sbr.rel (%p145) target = $region32
        $region31: #{tpu_custom_call.1} parent=27 // pred_region
          %148 = dma.done [#allocation3], 64
        $region32: #{tpu_custom_call.1} parent=27 // pred_fallthru
          _
        %s149 = sand.u32 %s49, 1
        %s150 = scalar_lea.sflag [#allocation6], %s149
        %s151 = sand.u32 %s49, 1
        %s152 = smul.addr %s151, 16
        %s153 = scalar_lea.vmem [#allocation5], %s152
        // Predicated region
        $region33: #{tpu_custom_call.1} parent=27 // pred_check
          %p154 = pneg %p62
        $region34: #{tpu_custom_call.1} parent=27 // pred_check_branch
          %156 = sbr.rel (%p154) target = $region36
        $region35: #{tpu_custom_call.1} parent=27 // pred_region
          %157 = dma.done %s150, 256
        $region36: #{tpu_custom_call.1} parent=27 // pred_fallthru
          _
        %p158 = pneg %p36
        %p159 = pneg %p33
        %s160 = sand.u32 %s49, 1
        %s161 = scalar_lea.sflag [#allocation6], %s160
        %s162 = sand.u32 %s49, 1
        %s163 = smul.addr %s162, 16
        %s164 = scalar_lea.vmem [#allocation5], %s163
        %p165 = pneg %p62
        %p166 = pneg %p59
        %p167 = pneg %p88
        %p168 = pneg %p85
        %s169 = sand.u32 %s75, 1
        %s170 = scalar_lea.sflag [#allocation4], %s169
        %s171 = sand.u32 %s75, 1
        %s172 = smul.addr %s171, 8
        %s173 = scalar_lea.vmem [#allocation7], %s172
        %v175 = vld [vmem:[#allocation2] sm:$0xf]
        %v176 = vld [vmem:[%s153] sm:$0xf]
        %v177 = vld [vmem:[%s153 + $0x4] sm:$0xf]
        %v178 = vld [vmem:[%s153 + $0x8] sm:$0xf]
        %v179 = vld [vmem:[%s153 + $0xc] sm:$0xf]
        %v184 = vunpack.c.l.b16 %v176
        %v185 = vunpack.c.l.b16 %v177
        %v186 = vunpack.c.l.b16 %v178
        %v187 = vunpack.c.l.b16 %v179
        %v188 = vpack.c.b16 %v185, %v184
        %v189 = vpack.c.b16 %v187, %v186
        %vm192 = vcmask 261120
        %v194 = vsel %vm192, %v175, 0
        %196 = vmatprep.subr.bf16.mxu0 0
        %197 = vmatpush1.bf16.msra.mxu0 %v188
        %198 = vmatprep.subr.bf16.mxu0 0
        %199 = vmatpush1.bf16.msra.mxu0 %v189
        %200 = vmatprep.subr.bf16.mxu0 0
        %201 = vmatpush1.bf16.msra.mxu0 0
        %202 = vmatprep.subr.bf16.mxu0 0
        %203 = vmatpush1.bf16.msra.mxu0 0
        %204 = vmatprep.subr.bf16.mxu0 0
        %205 = vmatpush1.bf16.msra.mxu0 0
        %206 = vmatprep.subr.bf16.mxu0 0
        %207 = vmatpush1.bf16.msra.mxu0 0
        %208 = vmatprep.subr.bf16.mxu0 0
        %209 = vmatpush1.bf16.msra.mxu0 0
        %210 = vmatprep.subr.bf16.mxu0 0
        %211 = vmatpush1.bf16.msra.mxu0 0
        %212 = vmatprep.subr.bf16.mxu0 0
        %213 = vmatpush1.bf16.msra.mxu0 0
        %214 = vmatprep.subr.bf16.mxu0 0
        %215 = vmatpush1.bf16.msra.mxu0 0
        %216 = vmatprep.subr.bf16.mxu0 0
        %217 = vmatpush1.bf16.msra.mxu0 0
        %218 = vmatprep.subr.bf16.mxu0 0
        %219 = vmatpush1.bf16.msra.mxu0 0
        %220 = vmatprep.subr.bf16.mxu0 0
        %221 = vmatpush1.bf16.msra.mxu0 0
        %222 = vmatprep.subr.bf16.mxu0 0
        %223 = vmatpush1.bf16.msra.mxu0 0
        %224 = vmatprep.subr.bf16.mxu0 0
        %225 = vmatpush1.bf16.msra.mxu0 0
        %226 = vmatprep.subr.bf16.mxu0 0
        %227 = vmatpush1.bf16.msra.mxu0 0
        %228 = vmatprep.mubr.bf16.mxu0 0
        %229 = vmatmul.mubr.bf16.gmra.mrb[0].mxu0 %v194
        %v230 = vpop.f32.mrb[0].mxu0
        %v231 = vadd.f32 0.0, %v230
        %v232 = vpop.f32.mrb[0].mxu0
        %v233 = vpop.f32.mrb[0].mxu0
        %v234 = vpop.f32.mrb[0].mxu0
        %235 = vdwg.mxu0
        %v236 = vmul.f32 %v231, 1.442695
        %v237 = vpow.pop %v236
        %s238 = sadd.s32 %s20, 1
        %s239 = smul.u32 %s238, 128
        %p240 = scmp.le.s32.totalorder %s239, 250
        // Predicated region
        $region37: #{tpu_custom_call.1} parent=27 // pred_check
          %p241 = pneg %p240
        $region38: #{tpu_custom_call.1} parent=27 // pred_check_branch
          %243 = sbr.rel (%p241) target = $region40
        $region39: #{tpu_custom_call.1} parent=27 // pred_region
          %244 = vst [vmem:[%s173] sm:$0xff] %v237
        $region40: #{tpu_custom_call.1} parent=27 // pred_fallthru
          _
        %p245 = scmp.gt.s32.totalorder %s239, 250
        // Predicated region
        $region41: #{tpu_custom_call.1} parent=27 // pred_check
          %p246 = pneg %p245
        $region42: #{tpu_custom_call.1} parent=27 // pred_check_branch
          %248 = sbr.rel (%p246) target = $region44
        $region43: #{tpu_custom_call.1} parent=27 // pred_region
          %v249 = vlaneseq
          %v250 = vand.u32 %v249, 127
          %s251 = smul.u32 %s20, 128
          %s252 = ssub.s32 250, %s251
          %v253 = vstv %s252
          %vm254 = vcmp.lt.s32.totalorder %v250, %v253
          %v255 = vsel %vm254, %v237, 0.0
          %256 = vst [vmem:[%s173] sm:$0xff] %v255
        $region44: #{tpu_custom_call.1} parent=27 // pred_fallthru
          _
        %s257 = sand.u32 %s75, 1
        %s258 = scalar_lea.sflag [#allocation4], %s257
        %s259 = sand.u32 %s75, 1
        %s260 = smul.addr %s259, 8
        %s261 = scalar_lea.vmem [#allocation7], %s260
        // Predicated region
        $region45: #{tpu_custom_call.1} parent=27 // pred_check
          %p262 = pneg %p85
        $region46: #{tpu_custom_call.1} parent=27 // pred_check_branch
          %264 = sbr.rel (%p262) target = $region48
        $region47: #{tpu_custom_call.1} parent=27 // pred_region
          %s266 = ssub.s32 128, 128
          %267 = vsyncadd %s258, %s266
          %s268 = smul.addr %s20, 128
          %s269 = scalar_lea.hbm %s2, %s268
          %s271 = sshll.u32 %s261, 4
          %s272 = int_to_ptr.vmem [resolvable:$true] %s271
          %274 = dma.vmem_to_hbm [thread:$0]  %s272, 128, %s269, %s258
        $region48: #{tpu_custom_call.1} parent=27 // pred_fallthru
          _
      $region28: #{tpu_custom_call.1} parent=5 // pred_fallthru
        _
      %p275 = scmp.le.s32.totalorder 2, %s15
      // Predicated region
      $region49: #{tpu_custom_call.1} parent=5 // pred_check
        %p276 = pneg %p275
      $region50: #{tpu_custom_call.1} parent=5 // pred_check_branch
        %278 = sbr.rel (%p276) target = $region52
      $region51: #{tpu_custom_call.1} parent=5 // pred_region
        %s279 = ssub.s32 %s15, 2
        // Predicated region
        $region53: #{tpu_custom_call.1} parent=51 // pred_check
          %p280 = pneg %p91
        $region54: #{tpu_custom_call.1} parent=51 // pred_check_branch
          %282 = sbr.rel (%p280) target = $region56
        $region55: #{tpu_custom_call.1} parent=51 // pred_region
          %s283 = sand.u32 %s76, 1
          %s284 = scalar_lea.sflag [#allocation4], %s283
          %s285 = sand.u32 %s76, 1
          %s286 = smul.addr %s285, 8
          %s287 = scalar_lea.vmem [#allocation7], %s286
          %288 = dma.done %s284, 128
        $region56: #{tpu_custom_call.1} parent=51 // pred_fallthru
          _
      $region52: #{tpu_custom_call.1} parent=5 // pred_fallthru
        _
    $region6: #{tpu_custom_call.1} parent=1 // loop_footer
      %s19 = sadd.s32 1, %s15
    $region7: #{tpu_custom_call.1} parent=1 // loop_footer_branch
      %14 = sbr.rel target = $region3
    $region8: #{tpu_custom_call.1} parent=1 // loop_exit
      _
    %289 = vsyncpa [#allocation3], 1
    %s290 = scalar_lea.sflag [#allocation3], 1
    %291 = vsyncpa %s290, 1
    %292 = vsyncpa [#allocation6], 1
    %s293 = scalar_lea.sflag [#allocation6], 1
    %294 = vsyncpa %s293, 1
    %295 = vsyncpa [#allocation4], 1
    %s296 = scalar_lea.sflag [#allocation4], 1
    %297 = vsyncpa %s296, 1

</llo_original>
